<compile_context>
chip_gen: v5e
topology: v5e:2x2
jax: 0.10.0
libtpu: 0.0.40
codegen_flags: <defaults>
</compile_context>

<pallas_src>
import functools
import math

import jax
import jax.numpy as jnp
from jax.experimental import pallas as pl
from jax.experimental.pallas import tpu as pltpu


_LANES = 128
_SUBLANES = 8
# Leading "parallel" grid axis: lets v7x shard the row range across its two
# TensorCores; on v5e/v6e (1 TC) it is just a trivially short outer loop.
_NUM_CORE_SPLITS = 2
# Double-buffered input tiles for all 3 streams (~2 MiB / stream / buffer):
# large enough to amortize the ~0.35 us per-grid-step overhead, small enough
# to leave headroom inside v7x's 64 MiB physical VMEM.
_INPUT_VMEM_BUDGET = 12 * 1024 * 1024
_VMEM_LIMIT_BYTES = 32 * 1024 * 1024
# Rows per inner compute chunk: bounds the f32 temporaries (probs/w2/...) so
# they stay vreg/VMEM-small and never compete with the DMA pipeline buffers.
_CHUNK_ROWS_TARGET = 128


def _cdiv(a, b):
    return -(-a // b)


def _round_up(a, b):
    return _cdiv(a, b) * b


def _sublane_align(dtype):
    # Packed sub-32-bit dtypes tile the sublane axis in pairs/quads:
    # f32 -> 8, bf16 -> 16, int8/fp8 -> 32.
    itemsize = jnp.dtype(dtype).itemsize
    return max(_SUBLANES, _SUBLANES * (4 // itemsize))


def _dice_kernel(logits_ref, labels_ref, weights_ref,
                 inter_ref, m1_ref, m2_ref, *,
                 rows_padded, tile_rows, chunk_rows, tiles_per_core, ragged):
    p = pl.program_id(0)          # core split ("parallel")
    j = pl.program_id(1)          # row-tile step within this split (reduction)

    @pl.when(j == 0)
    def _():
        inter_ref[...] = jnp.zeros(inter_ref.shape, jnp.float32)
        m1_ref[...] = jnp.zeros(m1_ref.shape, jnp.float32)
        m2_ref[...] = jnp.zeros(m2_ref.shape, jnp.float32)

    n = logits_ref.shape[0]
    num_chunks = tile_rows // chunk_rows
    # Unclamped global row offset of this tile.  (The index_map clamps the DMA
    # source for dead steps; the mask below uses the *unclamped* offset so
    # dead/ragged rows contribute exactly zero.)
    tile_row0 = (p * tiles_per_core + j) * tile_rows

    def fold(v):
        # (n, chunk_rows, 128) -> (1, n, 8, 128): elementwise vreg adds only,
        # no cross-lane (XLU) work in the hot loop.
        return jnp.sum(
            v.reshape(n, chunk_rows // _SUBLANES, _SUBLANES, _LANES), axis=1
        ).reshape(1, n, _SUBLANES, _LANES)

    def chunk_body(c, carry):
        r0 = pl.multiple_of(c * chunk_rows, chunk_rows)
        x = logits_ref[:, pl.ds(r0, chunk_rows), :].astype(jnp.float32)
        m2 = labels_ref[:, pl.ds(r0, chunk_rows), :].astype(jnp.float32)
        w = weights_ref[:, pl.ds(r0, chunk_rows), :].astype(jnp.float32)

        # sigmoid(x) = 0.5 * tanh(0.5 * x) + 0.5: the tanh runs on the EUP
        # slot, keeping the VALU path to two cheap mul/adds (no f32 divide).
        probs = 0.5 * jnp.tanh(0.5 * x) + 0.5
        w2 = w * w
        wp = w2 * probs           # shared by the intersection and m1 terms
        wl = w2 * m2
        inter = wp * m2

        if ragged:
            # Rows at/after rows_padded live outside the array; the pipeline
            # buffer holds garbage there, so *select* zero (a where, not a
            # multiply, so non-finite garbage never reaches the sums).
            row_ids = tile_row0 + r0 + jax.lax.broadcasted_iota(
                jnp.int32, (chunk_rows, _LANES), 0)
            valid = (row_ids < rows_padded)[None, :, :]
            inter = jnp.where(valid, inter, 0.0)
            wp = jnp.where(valid, wp, 0.0)
            wl = jnp.where(valid, wl, 0.0)

        inter_ref[...] += fold(inter)
        m1_ref[...] += fold(wp)
        m2_ref[...] += fold(wl)
        return carry

    jax.lax.fori_loop(0, num_chunks, chunk_body, 0,
                      unroll=num_chunks <= 8)


@jax.jit
def weighted_soft_dice_loss(logits, labels, weights):
    n = logits.shape[0]
    d = math.prod(logits.shape[1:])

    align = max(_sublane_align(logits.dtype), _sublane_align(labels.dtype),
                _sublane_align(weights.dtype))

    rows = _cdiv(d, _LANES)
    rows_padded = _round_up(rows, align)
    d_padded = rows_padded * _LANES

    # Inner chunk and DMA tile sizes (in rows), all multiples of `align`.
    chunk_rows = min(_round_up(_CHUNK_ROWS_TARGET, align), rows_padded)
    stream_bytes = sum(jnp.dtype(a.dtype).itemsize
                       for a in (logits, labels, weights))
    row_bytes = n * _LANES * stream_bytes
    budget_tr = max(chunk_rows, _INPUT_VMEM_BUDGET // (2 * row_bytes))
    split_tr = _round_up(_cdiv(rows_padded, _NUM_CORE_SPLITS), chunk_rows)
    tile_rows = min(budget_tr, split_tr, rows_padded)
    tile_rows = max(chunk_rows, tile_rows // chunk_rows * chunk_rows)

    total_tiles = _cdiv(rows_padded, tile_rows)
    tiles_per_core = _cdiv(total_tiles, _NUM_CORE_SPLITS)
    # True iff some tile rows fall outside the array (ragged last tile and/or
    # dead steps on the short core split) -> in-kernel row mask needed.
    ragged = _NUM_CORE_SPLITS * tiles_per_core * tile_rows != rows_padded

    def prep(x):
        x2 = x.reshape(n, d)                      # PyTorch's .view(num, -1)
        if d_padded != d:
            # Only when C*H*W isn't lane/packing aligned.  Zero padding is
            # exact: padded weights are 0, so every accumulated term is 0.
            x2 = jnp.pad(x2, ((0, 0), (0, d_padded - d)))
        return x2.reshape(n, rows_padded, _LANES)  # free reshape when unpadded

    logits3, labels3, weights3 = prep(logits), prep(labels), prep(weights)

    def in_index_map(p, j):
        t = p * tiles_per_core + j
        return (0, jnp.minimum(t, total_tiles - 1), 0)   # clamp dead steps

    in_spec = pl.BlockSpec((n, tile_rows, _LANES), in_index_map)
    out_spec = pl.BlockSpec((1, n, _SUBLANES, _LANES),
                            lambda p, j: (p, 0, 0, 0))
    out_sds = jax.ShapeDtypeStruct(
        (_NUM_CORE_SPLITS, n, _SUBLANES, _LANES), jnp.float32)

    kernel = functools.partial(
        _dice_kernel, rows_padded=rows_padded, tile_rows=tile_rows,
        chunk_rows=chunk_rows, tiles_per_core=tiles_per_core, ragged=ragged)

    in_bytes = n * d_padded * stream_bytes
    out_bytes = 3 * _NUM_CORE_SPLITS * n * _SUBLANES * _LANES * 4
    cost = pl.CostEstimate(flops=10 * n * d_padded,
                           transcendentals=n * d_padded,
                           bytes_accessed=in_bytes + out_bytes)

    inter_p, m1_p, m2_p = pl.pallas_call(
        kernel,
        out_shape=(out_sds, out_sds, out_sds),
        grid_spec=pltpu.PrefetchScalarGridSpec(
            num_scalar_prefetch=0,
            grid=(_NUM_CORE_SPLITS, tiles_per_core),
            in_specs=[in_spec, in_spec, in_spec],
            out_specs=[out_spec, out_spec, out_spec],
        ),
        compiler_params=pltpu.CompilerParams(
            dimension_semantics=("parallel", "arbitrary"),
            vmem_limit_bytes=_VMEM_LIMIT_BYTES,
        ),
        cost_estimate=cost,
    )(logits3, labels3, weights3)

    # Tiny per-sample combine (a few KiB) stays in plain XLA.
    inter_s = jnp.sum(inter_p, axis=(0, 2, 3))
    m1_s = jnp.sum(m1_p, axis=(0, 2, 3))
    m2_s = jnp.sum(m2_p, axis=(0, 2, 3))
    score = 2.0 * (inter_s + 1.0) / (m1_s + m2_s + 1.0)
    return 1.0 - jnp.sum(score) / n


def _reference(logits, labels, weights):
    n = logits.shape[0]
    probs = jax.nn.sigmoid(logits.astype(jnp.float32))
    m1 = probs.reshape(n, -1)
    m2 = labels.astype(jnp.float32).reshape(n, -1)
    w = weights.astype(jnp.float32).reshape(n, -1)
    w2 = w * w
    score = 2.0 * ((w2 * m1 * m2).sum(1) + 1.0) / (
        (w2 * m1).sum(1) + (w2 * m2).sum(1) + 1.0)
    return 1.0 - score.sum() / n


if __name__ == "__main__":
    key = jax.random.PRNGKey(0)
    k1, k2, k3 = jax.random.split(key, 3)

    N, C, H, W = 2, 4, 16, 16          # NCHW, like the PyTorch module
    logits = jax.random.normal(k1, (N, C, H, W), dtype=jnp.float32)
    labels = (jax.random.uniform(k2, (N, C, H, W)) > 0.5).astype(jnp.float32)
    weights = jax.random.uniform(k3, (N, C, H, W), dtype=jnp.float32) + 0.5

    ref = _reference(logits, labels, weights)

    loss = jax.block_until_ready(weighted_soft_dice_loss(logits, labels, weights))
    assert jnp.allclose(loss, ref, atol=1e-5, rtol=1e-5), (loss, ref)

    # Labels are exactly {0,1}: passing them as bf16 is lossless and cuts HBM
    # traffic ~17%; this call also exercises the packed-sublane (16-row) tiling
    # and the ragged-tail row-mask path.
    loss_bf16 = jax.block_until_ready(
        weighted_soft_dice_loss(logits, labels.astype(jnp.bfloat16), weights))
    assert jnp.allclose(loss_bf16, ref, atol=1e-5, rtol=1e-5), (loss_bf16, ref)

    print("KERNEL_OK")
</pallas_src>

<mosaic_0001>
module attributes {stable_mosaic.version = 11 : i64} {
  func.func @_dice_kernel(%arg0: i32, %arg1: i32, %arg2: memref<2x8x128xf32, #tpu.memory_space<vmem>>, %arg3: memref<2x8x128xf32, #tpu.memory_space<vmem>>, %arg4: memref<2x8x128xf32, #tpu.memory_space<vmem>>, %arg5: memref<1x2x8x128xf32, #tpu.memory_space<vmem>>, %arg6: memref<1x2x8x128xf32, #tpu.memory_space<vmem>>, %arg7: memref<1x2x8x128xf32, #tpu.memory_space<vmem>>) attributes {dimension_semantics = [#tpu.dimension_semantics<parallel>, #tpu.dimension_semantics<arbitrary>], iteration_bounds = array<i64: 2, 1>, scalar_prefetch = 0 : i64, scratch_operands = 0 : i64, tpu.core_type = #tpu.core_type<tc>, window_params = [{transform_indices = @transform_0, window_bounds = array<i64: 2, 8, 128>}, {transform_indices = @transform_1, window_bounds = array<i64: 2, 8, 128>}, {transform_indices = @transform_2, window_bounds = array<i64: 2, 8, 128>}, {transform_indices = @transform_3, window_bounds = array<i64: 1, 2, 8, 128>}, {transform_indices = @transform_4, window_bounds = array<i64: 1, 2, 8, 128>}, {transform_indices = @transform_5, window_bounds = array<i64: 1, 2, 8, 128>}]} {
    %c0_i32 = arith.constant 0 : i32
    %0 = arith.cmpi eq, %arg1, %c0_i32 : i32
    %1 = arith.extui %0 : i1 to i32
    %c0_i32_0 = arith.constant 0 : i32
    %2 = arith.cmpi ne, %1, %c0_i32_0 : i32
    scf.if %2 {
      %cst_42 = arith.constant 0.000000e+00 : f32
      %62 = vector.broadcast %cst_42 : f32 to vector<1x2x8x128xf32>
      %c0_43 = arith.constant 0 : index
      %c0_44 = arith.constant 0 : index
      %c0_45 = arith.constant 0 : index
      %c0_46 = arith.constant 0 : index
      %63 = vector.load %arg5[%c0_43, %c0_44, %c0_45, %c0_46] : memref<1x2x8x128xf32, #tpu.memory_space<vmem>>, vector<1x2x8x128xf32>
      tpu.vector_store %arg5[%c0_43, %c0_44, %c0_45, %c0_46], %62 {strides = array<i32>} : memref<1x2x8x128xf32, #tpu.memory_space<vmem>>, vector<1x2x8x128xf32>,
      %cst_47 = arith.constant 0.000000e+00 : f32
      %64 = vector.broadcast %cst_47 : f32 to vector<1x2x8x128xf32>
      %c0_48 = arith.constant 0 : index
      %c0_49 = arith.constant 0 : index
      %c0_50 = arith.constant 0 : index
      %c0_51 = arith.constant 0 : index
      %65 = vector.load %arg6[%c0_48, %c0_49, %c0_50, %c0_51] : memref<1x2x8x128xf32, #tpu.memory_space<vmem>>, vector<1x2x8x128xf32>
      tpu.vector_store %arg6[%c0_48, %c0_49, %c0_50, %c0_51], %64 {strides = array<i32>} : memref<1x2x8x128xf32, #tpu.memory_space<vmem>>, vector<1x2x8x128xf32>,
      %cst_52 = arith.constant 0.000000e+00 : f32
      %66 = vector.broadcast %cst_52 : f32 to vector<1x2x8x128xf32>
      %c0_53 = arith.constant 0 : index
      %c0_54 = arith.constant 0 : index
      %c0_55 = arith.constant 0 : index
      %c0_56 = arith.constant 0 : index
      %67 = vector.load %arg7[%c0_53, %c0_54, %c0_55, %c0_56] : memref<1x2x8x128xf32, #tpu.memory_space<vmem>>, vector<1x2x8x128xf32>
      tpu.vector_store %arg7[%c0_53, %c0_54, %c0_55, %c0_56], %66 {strides = array<i32>} : memref<1x2x8x128xf32, #tpu.memory_space<vmem>>, vector<1x2x8x128xf32>,
    } else {
    }
    %c1_i32 = arith.constant 1 : i32
    %3 = arith.muli %arg0, %c1_i32 : i32
    %4 = arith.addi %3, %arg1 : i32
    %c8_i32 = arith.constant 8 : i32
    %5 = arith.muli %4, %c8_i32 : i32
    %c0_i32_1 = arith.constant 0 : i32
    %c8_i32_2 = arith.constant 8 : i32
    %6 = arith.muli %c0_i32_1, %c8_i32_2 : i32
    %7 = tpu.assume_multiple %6, 8 : i32
    %c0 = arith.constant 0 : index
    %8 = arith.index_cast %7 : i32 to index
    %c0_3 = arith.constant 0 : index
    %9 = vector.load %arg2[%c0, %8, %c0_3] : memref<2x8x128xf32, #tpu.memory_space<vmem>>, vector<2x8x128xf32>
    %c0_4 = arith.constant 0 : index
    %10 = arith.index_cast %7 : i32 to index
    %c0_5 = arith.constant 0 : index
    %11 = vector.load %arg3[%c0_4, %10, %c0_5] : memref<2x8x128xf32, #tpu.memory_space<vmem>>, vector<2x8x128xf32>
    %c0_6 = arith.constant 0 : index
    %12 = arith.index_cast %7 : i32 to index
    %c0_7 = arith.constant 0 : index
    %13 = vector.load %arg4[%c0_6, %12, %c0_7] : memref<2x8x128xf32, #tpu.memory_space<vmem>>, vector<2x8x128xf32>
    %cst = arith.constant 5.000000e-01 : f32
    %14 = vector.broadcast %cst : f32 to vector<2x8x128xf32>
    %15 = arith.mulf %14, %9 : vector<2x8x128xf32>
    %16 = math.tanh %15 : vector<2x8x128xf32>
    %cst_8 = arith.constant 5.000000e-01 : f32
    %17 = vector.broadcast %cst_8 : f32 to vector<2x8x128xf32>
    %18 = arith.mulf %17, %16 : vector<2x8x128xf32>
    %cst_9 = arith.constant 5.000000e-01 : f32
    %19 = vector.broadcast %cst_9 : f32 to vector<2x8x128xf32>
    %20 = arith.addf %18, %19 : vector<2x8x128xf32>
    %21 = arith.mulf %13, %13 : vector<2x8x128xf32>
    %22 = arith.mulf %21, %20 : vector<2x8x128xf32>
    %23 = arith.mulf %21, %11 : vector<2x8x128xf32>
    %24 = arith.mulf %22, %11 : vector<2x8x128xf32>
    %25 = arith.addi %5, %7 : i32
    %26 = tpu.iota {dimensions = array<i32: 0>} : vector<8x128xi32>
    %27 = vector.broadcast %25 : i32 to vector<8x128xi32>
    %28 = arith.addi %27, %26 : vector<8x128xi32>
    %c8_i32_10 = arith.constant 8 : i32
    %29 = vector.broadcast %c8_i32_10 : i32 to vector<8x128xi32>
    %30 = arith.cmpi slt, %28, %29 : vector<8x128xi32>
    %31 = vector.shape_cast %30 : vector<8x128xi1> to vector<1x8x128xi1>
    %cst_11 = arith.constant 0.000000e+00 : f32
    %32 = vector.shape_cast %31 : vector<1x8x128xi1> to vector<1x8x128xi1>
    %33 = vector.broadcast %32 : vector<1x8x128xi1> to vector<2x8x128xi1>
    %34 = vector.broadcast %cst_11 : f32 to vector<2x8x128xf32>
    %35 = arith.select %33, %24, %34 : vector<2x8x128xi1>, vector<2x8x128xf32>
    %cst_12 = arith.constant 0.000000e+00 : f32
    %36 = vector.shape_cast %31 : vector<1x8x128xi1> to vector<1x8x128xi1>
    %37 = vector.broadcast %36 : vector<1x8x128xi1> to vector<2x8x128xi1>
    %38 = vector.broadcast %cst_12 : f32 to vector<2x8x128xf32>
    %39 = arith.select %37, %22, %38 : vector<2x8x128xi1>, vector<2x8x128xf32>
    %cst_13 = arith.constant 0.000000e+00 : f32
    %40 = vector.shape_cast %31 : vector<1x8x128xi1> to vector<1x8x128xi1>
    %41 = vector.broadcast %40 : vector<1x8x128xi1> to vector<2x8x128xi1>
    %42 = vector.broadcast %cst_13 : f32 to vector<2x8x128xf32>
    %43 = arith.select %41, %23, %42 : vector<2x8x128xi1>, vector<2x8x128xf32>
    %c0_14 = arith.constant 0 : index
    %c0_15 = arith.constant 0 : index
    %c0_16 = arith.constant 0 : index
    %c0_17 = arith.constant 0 : index
    %44 = vector.load %arg5[%c0_14, %c0_15, %c0_16, %c0_17] : memref<1x2x8x128xf32, #tpu.memory_space<vmem>>, vector<1x2x8x128xf32>
    %45 = vector.shape_cast %35 : vector<2x8x128xf32> to vector<2x1x8x128xf32>
    %cst_18 = arith.constant dense<0.000000e+00> : vector<2x8x128xf32>
    %46 = vector.multi_reduction <add>, %45, %cst_18 [1] : vector<2x1x8x128xf32> to vector<2x8x128xf32>
    %47 = vector.shape_cast %46 : vector<2x8x128xf32> to vector<1x2x8x128xf32>
    %48 = arith.addf %44, %47 : vector<1x2x8x128xf32>
    %c0_19 = arith.constant 0 : index
    %c0_20 = arith.constant 0 : index
    %c0_21 = arith.constant 0 : index
    %c0_22 = arith.constant 0 : index
    %49 = vector.load %arg5[%c0_19, %c0_20, %c0_21, %c0_22] : memref<1x2x8x128xf32, #tpu.memory_space<vmem>>, vector<1x2x8x128xf32>
    tpu.vector_store %arg5[%c0_19, %c0_20, %c0_21, %c0_22], %48 {strides = array<i32>} : memref<1x2x8x128xf32, #tpu.memory_space<vmem>>, vector<1x2x8x128xf32>,
    %c0_23 = arith.constant 0 : index
    %c0_24 = arith.constant 0 : index
    %c0_25 = arith.constant 0 : index
    %c0_26 = arith.constant 0 : index
    %50 = vector.load %arg6[%c0_23, %c0_24, %c0_25, %c0_26] : memref<1x2x8x128xf32, #tpu.memory_space<vmem>>, vector<1x2x8x128xf32>
    %51 = vector.shape_cast %39 : vector<2x8x128xf32> to vector<2x1x8x128xf32>
    %cst_27 = arith.constant dense<0.000000e+00> : vector<2x8x128xf32>
    %52 = vector.multi_reduction <add>, %51, %cst_27 [1] : vector<2x1x8x128xf32> to vector<2x8x128xf32>
    %53 = vector.shape_cast %52 : vector<2x8x128xf32> to vector<1x2x8x128xf32>
    %54 = arith.addf %50, %53 : vector<1x2x8x128xf32>
    %c0_28 = arith.constant 0 : index
    %c0_29 = arith.constant 0 : index
    %c0_30 = arith.constant 0 : index
    %c0_31 = arith.constant 0 : index
    %55 = vector.load %arg6[%c0_28, %c0_29, %c0_30, %c0_31] : memref<1x2x8x128xf32, #tpu.memory_space<vmem>>, vector<1x2x8x128xf32>
    tpu.vector_store %arg6[%c0_28, %c0_29, %c0_30, %c0_31], %54 {strides = array<i32>} : memref<1x2x8x128xf32, #tpu.memory_space<vmem>>, vector<1x2x8x128xf32>,
    %c0_32 = arith.constant 0 : index
    %c0_33 = arith.constant 0 : index
    %c0_34 = arith.constant 0 : index
    %c0_35 = arith.constant 0 : index
    %56 = vector.load %arg7[%c0_32, %c0_33, %c0_34, %c0_35] : memref<1x2x8x128xf32, #tpu.memory_space<vmem>>, vector<1x2x8x128xf32>
    %57 = vector.shape_cast %43 : vector<2x8x128xf32> to vector<2x1x8x128xf32>
    %cst_36 = arith.constant dense<0.000000e+00> : vector<2x8x128xf32>
    %58 = vector.multi_reduction <add>, %57, %cst_36 [1] : vector<2x1x8x128xf32> to vector<2x8x128xf32>
    %59 = vector.shape_cast %58 : vector<2x8x128xf32> to vector<1x2x8x128xf32>
    %60 = arith.addf %56, %59 : vector<1x2x8x128xf32>
    %c0_37 = arith.constant 0 : index
    %c0_38 = arith.constant 0 : index
    %c0_39 = arith.constant 0 : index
    %c0_40 = arith.constant 0 : index
    %61 = vector.load %arg7[%c0_37, %c0_38, %c0_39, %c0_40] : memref<1x2x8x128xf32, #tpu.memory_space<vmem>>, vector<1x2x8x128xf32>
    tpu.vector_store %arg7[%c0_37, %c0_38, %c0_39, %c0_40], %60 {strides = array<i32>} : memref<1x2x8x128xf32, #tpu.memory_space<vmem>>, vector<1x2x8x128xf32>,
    %c1_i32_41 = arith.constant 1 : i32
    return
  }
  func.func @transform_0(%arg0: i32, %arg1: i32) -> (i32, i32, i32) {
    %c1_i32 = arith.constant 1 : i32
    %0 = arith.muli %arg0, %c1_i32 : i32
    %1 = arith.addi %0, %arg1 : i32
    %c0_i32 = arith.constant 0 : i32
    %2 = arith.minsi %1, %c0_i32 : i32
    %c0_i32_0 = arith.constant 0 : i32
    %c0_i32_1 = arith.constant 0 : i32
    %c0_i32_2 = arith.constant 0 : i32
    return %c0_i32_0, %2, %c0_i32_1 : i32, i32, i32
  }
  func.func @transform_1(%arg0: i32, %arg1: i32) -> (i32, i32, i32) {
    %c1_i32 = arith.constant 1 : i32
    %0 = arith.muli %arg0, %c1_i32 : i32
    %1 = arith.addi %0, %arg1 : i32
    %c0_i32 = arith.constant 0 : i32
    %2 = arith.minsi %1, %c0_i32 : i32
    %c0_i32_0 = arith.constant 0 : i32
    %c0_i32_1 = arith.constant 0 : i32
    %c0_i32_2 = arith.constant 0 : i32
    return %c0_i32_0, %2, %c0_i32_1 : i32, i32, i32
  }
  func.func @transform_2(%arg0: i32, %arg1: i32) -> (i32, i32, i32) {
    %c1_i32 = arith.constant 1 : i32
    %0 = arith.muli %arg0, %c1_i32 : i32
    %1 = arith.addi %0, %arg1 : i32
    %c0_i32 = arith.constant 0 : i32
    %2 = arith.minsi %1, %c0_i32 : i32
    %c0_i32_0 = arith.constant 0 : i32
    %c0_i32_1 = arith.constant 0 : i32
    %c0_i32_2 = arith.constant 0 : i32
    return %c0_i32_0, %2, %c0_i32_1 : i32, i32, i32
  }
  func.func @transform_3(%arg0: i32, %arg1: i32) -> (i32, i32, i32, i32) {
    %c0_i32 = arith.constant 0 : i32
    %c0_i32_0 = arith.constant 0 : i32
    %c0_i32_1 = arith.constant 0 : i32
    %c0_i32_2 = arith.constant 0 : i32
    return %arg0, %c0_i32, %c0_i32_0, %c0_i32_1 : i32, i32, i32, i32
  }
  func.func @transform_4(%arg0: i32, %arg1: i32) -> (i32, i32, i32, i32) {
    %c0_i32 = arith.constant 0 : i32
    %c0_i32_0 = arith.constant 0 : i32
    %c0_i32_1 = arith.constant 0 : i32
    %c0_i32_2 = arith.constant 0 : i32
    return %arg0, %c0_i32, %c0_i32_0, %c0_i32_1 : i32, i32, i32, i32
  }
  func.func @transform_5(%arg0: i32, %arg1: i32) -> (i32, i32, i32, i32) {
    %c0_i32 = arith.constant 0 : i32
    %c0_i32_0 = arith.constant 0 : i32
    %c0_i32_1 = arith.constant 0 : i32
    %c0_i32_2 = arith.constant 0 : i32
    return %arg0, %c0_i32, %c0_i32_0, %c0_i32_1 : i32, i32, i32, i32
  }
}

</mosaic_0001>

<llo_original>
// kernel: weighted_soft_dice_loss.1
$region0: #{weighted_soft_dice_loss.1}
  #allocation0 [shape = 'u32[]', space=smem, size = 0x4, offset = 0x4, fixed_abs, tag = 'smem constant byte address 0x4 - core index']
  #allocation1 [shape = 'u32[72,128]{1,0:T(1,128)}', space=vmem, size = 0x9000, scoped, tag = 'internal scratch']
  %s0 = inlined_call_operand.vmem [shape: f32[2,8,128], index: 0, kind: input, shape index: {}]
  %s1 = inlined_call_operand.vmem [shape: f32[2,8,128], index: 1, kind: input, shape index: {}]
  %s2 = inlined_call_operand.vmem [shape: f32[2,8,128], index: 2, kind: input, shape index: {}]
  %s3 = inlined_call_operand.vmem [shape: f32[2,2,8,128], index: 3, kind: output, shape index: {0}]
  %s4 = inlined_call_operand.vmem [shape: f32[2,2,8,128], index: 4, kind: output, shape index: {1}]
  %s5 = inlined_call_operand.vmem [shape: f32[2,2,8,128], index: 5, kind: output, shape index: {2}]
  %6 = xla_tuple %s3, %s4, %s5
  %s7 = sld [smem:[#allocation0]]
  $region65: #{weighted_soft_dice_loss.1} parent=0
    _
  %s9 = ssub.s32 1, %s7
  %s10 = scalar_select 0, %s9, %s7
  loop: start=0, step=1, limit=4
  $region2: #{weighted_soft_dice_loss.1} parent=0 // loop_pre_header
    _
  $region3: #{weighted_soft_dice_loss.1} parent=0 // loop_header
    %s12 = sphi 0, %s16
    %p13 = scmp.ge.s32.totalorder %s12, 4
    %s19 = sphi 0, %s31
    %s20 = sphi 0, %s27
    %s21 = sphi 0, %s19
    %s22 = sphi 0, %s20
    %s23 = sphi 0, %s21
    %s24 = sphi 0, %s22
    %s40 = sphi 0, %s42
    %s43 = sphi 0, %s40
    %s44 = sphi 0, %s43
    %s60 = sphi 0, %s44
    %s72 = sphi 0, %s74
    %s75 = sphi 0, %s72
    %s76 = sphi 0, %s75
    %s92 = sphi 0, %s76
    %s104 = sphi 0, %s106
    %s107 = sphi 0, %s104
    %s108 = sphi 0, %s107
    %s124 = sphi 0, %s108
    %s130 = sphi 0, %s132
    %s133 = sphi 0, %s130
    %s134 = sphi 0, %s133
    %s150 = sphi 0, %s134
    %s156 = sphi 0, %s158
    %s159 = sphi 0, %s156
    %s160 = sphi 0, %s159
    %s176 = sphi 0, %s160
    %s182 = sphi 0, %s184
    %s185 = sphi 0, %s182
    %s186 = sphi 0, %s185
    %s202 = sphi 0, %s186
  $region4: #{weighted_soft_dice_loss.1} parent=0 // loop_header_branch
    %15 = sbr.rel (%p13) target = $region8
  $region5: #{weighted_soft_dice_loss.1} parent=0 // loop_body
    %s17 = ssub.s32 %s12, 1
    %s18 = ssub.s32 %s12, 2
    %s25 = sadd.s32 1, %s20
    %p26 = scmp.ge.s32.totalorder %s25, 1
    %s27 = scalar_select %p26, 0, %s25
    %s28 = sadd.s32 1, %s19
    %s29 = scalar_select %p26, %s28, %s19
    %p30 = scmp.ge.s32.totalorder %s29, 2
    %s31 = scalar_select %p30, 0, %s29
    %s32 = sadd.s32 %s19, %s20
    %p33 = scmp.lt.s32.totalorder %s32, 0
    %s34 = scalar_select %p33, %s32, 0
    %s35 = sadd.s32 %s31, %s27
    %p36 = scmp.lt.s32.totalorder %s35, 0
    %s37 = scalar_select %p36, %s35, 0
    %s38 = ssub.s32 %s34, %s37
    %p39 = scmp.eq.s32.totalorder %s38, 0
    %s41 = sadd.s32 %s40, 1
    %s42 = scalar_select %p39, %s40, %s41
    %p45 = pneg %p39
    %p46 = scmp.eq.s32.totalorder %s12, 1
    %p47 = por %p45, %p46
    %p48 = scmp.ne.s32.totalorder %s40, %s43
    %p49 = scmp.eq.s32.totalorder %s12, 0
    %p50 = por %p48, %p49
    %p51 = scmp.ne.s32.totalorder %s40, %s43
    %p52 = scmp.eq.s32.totalorder %s17, 1
    %p53 = por %p51, %p52
    %p54 = scmp.ne.s32.totalorder %s43, %s44
    %p55 = scmp.eq.s32.totalorder %s17, 0
    %p56 = por %p54, %p55
    %p57 = scmp.ne.s32.totalorder %s43, %s44
    %p58 = scmp.eq.s32.totalorder %s18, 1
    %p59 = por %p57, %p58
    %p61 = scmp.ne.s32.totalorder %s44, %s60
    %p62 = scmp.eq.s32.totalorder %s18, 0
    %p63 = por %p61, %p62
    %s64 = sadd.s32 %s19, %s20
    %p65 = scmp.lt.s32.totalorder %s64, 0
    %s66 = scalar_select %p65, %s64, 0
    %s67 = sadd.s32 %s31, %s27
    %p68 = scmp.lt.s32.totalorder %s67, 0
    %s69 = scalar_select %p68, %s67, 0
    %s70 = ssub.s32 %s66, %s69
    %p71 = scmp.eq.s32.totalorder %s70, 0
    %s73 = sadd.s32 %s72, 1
    %s74 = scalar_select %p71, %s72, %s73
    %p77 = pneg %p71
    %p78 = scmp.eq.s32.totalorder %s12, 1
    %p79 = por %p77, %p78
    %p80 = scmp.ne.s32.totalorder %s72, %s75
    %p81 = scmp.eq.s32.totalorder %s12, 0
    %p82 = por %p80, %p81
    %p83 = scmp.ne.s32.totalorder %s72, %s75
    %p84 = scmp.eq.s32.totalorder %s17, 1
    %p85 = por %p83, %p84
    %p86 = scmp.ne.s32.totalorder %s75, %s76
    %p87 = scmp.eq.s32.totalorder %s17, 0
    %p88 = por %p86, %p87
    %p89 = scmp.ne.s32.totalorder %s75, %s76
    %p90 = scmp.eq.s32.totalorder %s18, 1
    %p91 = por %p89, %p90
    %p93 = scmp.ne.s32.totalorder %s76, %s92
    %p94 = scmp.eq.s32.totalorder %s18, 0
    %p95 = por %p93, %p94
    %s96 = sadd.s32 %s19, %s20
    %p97 = scmp.lt.s32.totalorder %s96, 0
    %s98 = scalar_select %p97, %s96, 0
    %s99 = sadd.s32 %s31, %s27
    %p100 = scmp.lt.s32.totalorder %s99, 0
    %s101 = scalar_select %p100, %s99, 0
    %s102 = ssub.s32 %s98, %s101
    %p103 = scmp.eq.s32.totalorder %s102, 0
    %s105 = sadd.s32 %s104, 1
    %s106 = scalar_select %p103, %s104, %s105
    %p109 = pneg %p103
    %p110 = scmp.eq.s32.totalorder %s12, 1
    %p111 = por %p109, %p110
    %p112 = scmp.ne.s32.totalorder %s104, %s107
    %p113 = scmp.eq.s32.totalorder %s12, 0
    %p114 = por %p112, %p113
    %p115 = scmp.ne.s32.totalorder %s104, %s107
    %p116 = scmp.eq.s32.totalorder %s17, 1
    %p117 = por %p115, %p116
    %p118 = scmp.ne.s32.totalorder %s107, %s108
    %p119 = scmp.eq.s32.totalorder %s17, 0
    %p120 = por %p118, %p119
    %p121 = scmp.ne.s32.totalorder %s107, %s108
    %p122 = scmp.eq.s32.totalorder %s18, 1
    %p123 = por %p121, %p122
    %p125 = scmp.ne.s32.totalorder %s108, %s124
    %p126 = scmp.eq.s32.totalorder %s18, 0
    %p127 = por %p125, %p126
    %s128 = ssub.s32 %s19, %s31
    %p129 = scmp.eq.s32.totalorder %s128, 0
    %s131 = sadd.s32 %s130, 1
    %s132 = scalar_select %p129, %s130, %s131
    %p135 = pneg %p129
    %p136 = scmp.eq.s32.totalorder %s12, 1
    %p137 = por %p135, %p136
    %p138 = scmp.ne.s32.totalorder %s130, %s133
    %p139 = scmp.eq.s32.totalorder %s12, 0
    %p140 = por %p138, %p139
    %p141 = scmp.ne.s32.totalorder %s130, %s133
    %p142 = scmp.eq.s32.totalorder %s17, 1
    %p143 = por %p141, %p142
    %p144 = scmp.ne.s32.totalorder %s133, %s134
    %p145 = scmp.eq.s32.totalorder %s17, 0
    %p146 = por %p144, %p145
    %p147 = scmp.ne.s32.totalorder %s133, %s134
    %p148 = scmp.eq.s32.totalorder %s18, 1
    %p149 = por %p147, %p148
    %p151 = scmp.ne.s32.totalorder %s134, %s150
    %p152 = scmp.eq.s32.totalorder %s18, 0
    %p153 = por %p151, %p152
    %s154 = ssub.s32 %s19, %s31
    %p155 = scmp.eq.s32.totalorder %s154, 0
    %s157 = sadd.s32 %s156, 1
    %s158 = scalar_select %p155, %s156, %s157
    %p161 = pneg %p155
    %p162 = scmp.eq.s32.totalorder %s12, 1
    %p163 = por %p161, %p162
    %p164 = scmp.ne.s32.totalorder %s156, %s159
    %p165 = scmp.eq.s32.totalorder %s12, 0
    %p166 = por %p164, %p165
    %p167 = scmp.ne.s32.totalorder %s156, %s159
    %p168 = scmp.eq.s32.totalorder %s17, 1
    %p169 = por %p167, %p168
    %p170 = scmp.ne.s32.totalorder %s159, %s160
    %p171 = scmp.eq.s32.totalorder %s17, 0
    %p172 = por %p170, %p171
    %p173 = scmp.ne.s32.totalorder %s159, %s160
    %p174 = scmp.eq.s32.totalorder %s18, 1
    %p175 = por %p173, %p174
    %p177 = scmp.ne.s32.totalorder %s160, %s176
    %p178 = scmp.eq.s32.totalorder %s18, 0
    %p179 = por %p177, %p178
    %s180 = ssub.s32 %s19, %s31
    %p181 = scmp.eq.s32.totalorder %s180, 0
    %s183 = sadd.s32 %s182, 1
    %s184 = scalar_select %p181, %s182, %s183
    %p187 = pneg %p181
    %p188 = scmp.eq.s32.totalorder %s12, 1
    %p189 = por %p187, %p188
    %p190 = scmp.ne.s32.totalorder %s182, %s185
    %p191 = scmp.eq.s32.totalorder %s12, 0
    %p192 = por %p190, %p191
    %p193 = scmp.ne.s32.totalorder %s182, %s185
    %p194 = scmp.eq.s32.totalorder %s17, 1
    %p195 = por %p193, %p194
    %p196 = scmp.ne.s32.totalorder %s185, %s186
    %p197 = scmp.eq.s32.totalorder %s17, 0
    %p198 = por %p196, %p197
    %p199 = scmp.ne.s32.totalorder %s185, %s186
    %p200 = scmp.eq.s32.totalorder %s18, 1
    %p201 = por %p199, %p200
    %p203 = scmp.ne.s32.totalorder %s186, %s202
    %p204 = scmp.eq.s32.totalorder %s18, 0
    %p205 = por %p203, %p204
    %p206 = scmp.le.s32.totalorder 1, %s12
    %p207 = scmp.lt.s32.totalorder %s12, 3
    %p208 = pnand %p206, %p207
    %p209 = pneg %p208
    // Predicated region
    $region9: #{weighted_soft_dice_loss.1} parent=5 // pred_check
      _
    $region10: #{weighted_soft_dice_loss.1} parent=5 // pred_check_branch
      %211 = sbr.rel (%p208) target = $region12
    $region11: #{weighted_soft_dice_loss.1} parent=5 // pred_region
      %s212 = ssub.s32 %s12, 1
    $region12: #{weighted_soft_dice_loss.1} parent=5 // pred_fallthru
      _
    %p213 = scmp.lt.s32.totalorder %s12, 2
    // Predicated region
    $region13: #{weighted_soft_dice_loss.1} parent=5 // pred_check
      %p214 = pneg %p213
    $region14: #{weighted_soft_dice_loss.1} parent=5 // pred_check_branch
      %216 = sbr.rel (%p214) target = $region16
    $region15: #{weighted_soft_dice_loss.1} parent=5 // pred_region
      // Predicated region
      $region17: #{weighted_soft_dice_loss.1} parent=15 // pred_check
        %p217 = pneg %p50
      $region18: #{weighted_soft_dice_loss.1} parent=15 // pred_check_branch
        %219 = sbr.rel (%p217) target = $region20
      $region19: #{weighted_soft_dice_loss.1} parent=15 // pred_region
        %s220 = sadd.s32 %s19, %s20
        %p221 = scmp.lt.s32.totalorder %s220, 0
        %s222 = scalar_select %p221, %s220, 0
        %p223 = scmp.lt.s32.totalorder %s222, 0
        %s224 = scalar_select %p223, %s222, 0
        %s225 = smul.addr %s224, 8
        %s226 = scalar_lea.vmem %s0, %s225
        %s227 = sadd.s32 %s19, %s20
        %p228 = scmp.lt.s32.totalorder %s227, 0
        %s229 = scalar_select %p228, %s227, 0
      $region20: #{weighted_soft_dice_loss.1} parent=15 // pred_fallthru
        _
      // Predicated region
      $region21: #{weighted_soft_dice_loss.1} parent=15 // pred_check
        %p230 = pneg %p82
      $region22: #{weighted_soft_dice_loss.1} parent=15 // pred_check_branch
        %232 = sbr.rel (%p230) target = $region24
      $region23: #{weighted_soft_dice_loss.1} parent=15 // pred_region
        %s233 = sadd.s32 %s19, %s20
        %p234 = scmp.lt.s32.totalorder %s233, 0
        %s235 = scalar_select %p234, %s233, 0
        %p236 = scmp.lt.s32.totalorder %s235, 0
        %s237 = scalar_select %p236, %s235, 0
        %s238 = smul.addr %s237, 8
        %s239 = scalar_lea.vmem %s1, %s238
        %s240 = sadd.s32 %s19, %s20
        %p241 = scmp.lt.s32.totalorder %s240, 0
        %s242 = scalar_select %p241, %s240, 0
      $region24: #{weighted_soft_dice_loss.1} parent=15 // pred_fallthru
        _
      // Predicated region
      $region25: #{weighted_soft_dice_loss.1} parent=15 // pred_check
        %p243 = pneg %p114
      $region26: #{weighted_soft_dice_loss.1} parent=15 // pred_check_branch
        %245 = sbr.rel (%p243) target = $region28
      $region27: #{weighted_soft_dice_loss.1} parent=15 // pred_region
        %s246 = sadd.s32 %s19, %s20
        %p247 = scmp.lt.s32.totalorder %s246, 0
        %s248 = scalar_select %p247, %s246, 0
        %p249 = scmp.lt.s32.totalorder %s248, 0
        %s250 = scalar_select %p249, %s248, 0
        %s251 = smul.addr %s250, 8
        %s252 = scalar_lea.vmem %s2, %s251
        %s253 = sadd.s32 %s19, %s20
        %p254 = scmp.lt.s32.totalorder %s253, 0
        %s255 = scalar_select %p254, %s253, 0
      $region28: #{weighted_soft_dice_loss.1} parent=15 // pred_fallthru
        _
    $region16: #{weighted_soft_dice_loss.1} parent=5 // pred_fallthru
      _
    %p256 = scmp.le.s32.totalorder 1, %s12
    %p257 = scmp.lt.s32.totalorder %s12, 3
    %p258 = pnand %p256, %p257
    %p259 = pneg %p258
    // Predicated region
    $region29: #{weighted_soft_dice_loss.1} parent=5 // pred_check
      _
    $region30: #{weighted_soft_dice_loss.1} parent=5 // pred_check_branch
      %261 = sbr.rel (%p258) target = $region32
    $region31: #{weighted_soft_dice_loss.1} parent=5 // pred_region
      %s262 = ssub.s32 %s12, 1
      %s263 = sadd.s32 %s21, %s22
      %p264 = scmp.lt.s32.totalorder %s263, 0
      %s265 = scalar_select %p264, %s263, 0
      %p266 = scmp.lt.s32.totalorder %s265, 0
      %s267 = scalar_select %p266, %s265, 0
      %s268 = smul.addr %s267, 8
      %s269 = scalar_lea.vmem %s0, %s268
      %p270 = pneg %p56
      %p271 = pneg %p53
      %s272 = sadd.s32 %s21, %s22
      %p273 = scmp.lt.s32.totalorder %s272, 0
      %s274 = scalar_select %p273, %s272, 0
      %p275 = scmp.lt.s32.totalorder %s274, 0
      %s276 = scalar_select %p275, %s274, 0
      %s277 = smul.addr %s276, 8
      %s278 = scalar_lea.vmem %s1, %s277
      %p279 = pneg %p88
      %p280 = pneg %p85
      %s281 = sadd.s32 %s21, %s22
      %p282 = scmp.lt.s32.totalorder %s281, 0
      %s283 = scalar_select %p282, %s281, 0
      %p284 = scmp.lt.s32.totalorder %s283, 0
      %s285 = scalar_select %p284, %s283, 0
      %s286 = smul.addr %s285, 8
      %s287 = scalar_lea.vmem %s2, %s286
      %p288 = pneg %p120
      %p289 = pneg %p117
      %p290 = pneg %p146
      %p291 = pneg %p143
      %p292 = scmp.lt.s32.totalorder %s21, 1
      %s293 = scalar_select %p292, %s21, 1
      %s294 = smul.addr %s293, 2
      %s295 = smul.addr %s294, 8
      %s296 = scalar_lea.vmem %s3, %s295
      %p297 = pneg %p172
      %p298 = pneg %p169
      %p299 = scmp.lt.s32.totalorder %s21, 1
      %s300 = scalar_select %p299, %s21, 1
      %s301 = smul.addr %s300, 2
      %s302 = smul.addr %s301, 8
      %s303 = scalar_lea.vmem %s4, %s302
      %p304 = pneg %p198
      %p305 = pneg %p195
      %p306 = scmp.lt.s32.totalorder %s21, 1
      %s307 = scalar_select %p306, %s21, 1
      %s308 = smul.addr %s307, 2
      %s309 = smul.addr %s308, 8
      %s310 = scalar_lea.vmem %s5, %s309
      %s311 = sadd.s32 %s21, %s22
      %p312 = scmp.lt.s32.totalorder %s311, 0
      %s313 = scalar_select %p312, %s311, 0
      %p314 = scmp.lt.s32.totalorder %s313, 0
      %s315 = scalar_select %p314, %s313, 0
      %s316 = smul.addr %s315, 8
      %s317 = scalar_lea.vmem %s0, %s316
      %s318 = sadd.s32 %s21, %s22
      %p319 = scmp.lt.s32.totalorder %s318, 0
      %s320 = scalar_select %p319, %s318, 0
      %s321 = sadd.s32 %s21, %s22
      %p322 = scmp.lt.s32.totalorder %s321, 0
      %s323 = scalar_select %p322, %s321, 0
      %p324 = scmp.lt.s32.totalorder %s323, 0
      %s325 = scalar_select %p324, %s323, 0
      %s326 = smul.addr %s325, 8
      %s327 = scalar_lea.vmem %s1, %s326
      %s328 = sadd.s32 %s21, %s22
      %p329 = scmp.lt.s32.totalorder %s328, 0
      %s330 = scalar_select %p329, %s328, 0
      %s331 = sadd.s32 %s21, %s22
      %p332 = scmp.lt.s32.totalorder %s331, 0
      %s333 = scalar_select %p332, %s331, 0
      %p334 = scmp.lt.s32.totalorder %s333, 0
      %s335 = scalar_select %p334, %s333, 0
      %s336 = smul.addr %s335, 8
      %s337 = scalar_lea.vmem %s2, %s336
      %s338 = sadd.s32 %s21, %s22
      %p339 = scmp.lt.s32.totalorder %s338, 0
      %s340 = scalar_select %p339, %s338, 0
      %p341 = scmp.lt.s32.totalorder %s21, 1
      %s342 = scalar_select %p341, %s21, 1
      %s343 = smul.addr %s342, 2
      %s344 = smul.addr %s343, 8
      %s345 = scalar_lea.vmem %s3, %s344
      %p346 = scmp.lt.s32.totalorder %s21, 1
      %s347 = scalar_select %p346, %s21, 1
      %s348 = smul.addr %s347, 2
      %s349 = smul.addr %s348, 8
      %s350 = scalar_lea.vmem %s4, %s349
      %p351 = scmp.lt.s32.totalorder %s21, 1
      %s352 = scalar_select %p351, %s21, 1
      %s353 = smul.addr %s352, 2
      %s354 = smul.addr %s353, 8
      %s355 = scalar_lea.vmem %s5, %s354
      %p356 = scmp.eq.s32.totalorder %s22, 0
      // Predicated region
      $region33: #{weighted_soft_dice_loss.1} parent=31 // pred_check
        %p357 = pneg %p356
      $region34: #{weighted_soft_dice_loss.1} parent=31 // pred_check_branch
        %359 = sbr.rel (%p357) target = $region36
      $region35: #{weighted_soft_dice_loss.1} parent=31 // pred_region
        %360 = vst [vmem:[%s345] sm:$0xff] 0.0
        %361 = vst [vmem:[%s345 + $0x8] sm:$0xff] 0.0
        %362 = vst [vmem:[%s350] sm:$0xff] 0.0
        %363 = vst [vmem:[%s350 + $0x8] sm:$0xff] 0.0
        %364 = vst [vmem:[%s355] sm:$0xff] 0.0
        %365 = vst [vmem:[%s355 + $0x8] sm:$0xff] 0.0
      $region36: #{weighted_soft_dice_loss.1} parent=31 // pred_fallthru
        _
      %s366 = sadd.s32 %s21, %s22
      %s367 = smul.u32 %s366, 8
      %v368 = vld [vmem:[%s317] sm:$0xff]
      %v369 = vld [vmem:[%s317 + $0x8] sm:$0xff]
      %v370 = vld [vmem:[%s327] sm:$0xff]
      %v371 = vld [vmem:[%s327 + $0x8] sm:$0xff]
      %v372 = vld [vmem:[%s337] sm:$0xff]
      %v373 = vld [vmem:[%s337 + $0x8] sm:$0xff]
      %v374 = vmul.f32 %v368, 0.5
      %v375 = vmul.f32 %v369, 0.5
      %v376 = vtanh.pop %v374
      %v377 = vtanh.pop %v375
      %v378 = vmul.f32 %v376, 0.5
      %v379 = vmul.f32 %v377, 0.5
      %v380 = vadd.f32 %v378, 0.5
      %v381 = vadd.f32 %v379, 0.5
      %v382 = vmul.f32 %v372, %v372
      %v383 = vmul.f32 %v373, %v373
      %v384 = vmul.f32 %v382, %v380
      %v385 = vmul.f32 %v383, %v381
      %v386 = vmul.f32 %v382, %v370
      %v387 = vmul.f32 %v383, %v371
      %v388 = vmul.f32 %v384, %v370
      %v389 = vmul.f32 %v385, %v371
      %s390 = sadd.s32 %s367, 0
      %v391 = vlaneseq
      %v392 = vshrl.u32 %v391, 7
      %v393 = vstv %s390
      %v394 = vadd.s32 %v393, %v392
      %vm395 = vcmp.lt.s32.totalorder %v394, 8
      %v396 = vsel %vm395, 1, 0
      %vm397 = vcmp.eq.s32.totalorder %v396, 1
      %v398 = vsel %vm397, %v388, 0.0
      %v399 = vsel %vm397, %v389, 0.0
      %v400 = vsel %vm397, %v384, 0.0
      %v401 = vsel %vm397, %v385, 0.0
      %v402 = vsel %vm397, %v386, 0.0
      %v403 = vsel %vm397, %v387, 0.0
      %v404 = vld [vmem:[%s345] sm:$0xff]
      %v405 = vld [vmem:[%s345 + $0x8] sm:$0xff]
      %v406 = vadd.f32 %v398, 0.0
      %v407 = vadd.f32 %v399, 0.0
      %v408 = vadd.f32 %v404, %v406
      %v409 = vadd.f32 %v405, %v407
      %410 = vst [vmem:[%s345] sm:$0xff] %v408
      %411 = vst [vmem:[%s345 + $0x8] sm:$0xff] %v409
      %v412 = vld [vmem:[%s350] sm:$0xff]
      %v413 = vld [vmem:[%s350 + $0x8] sm:$0xff]
      %v414 = vadd.f32 %v400, 0.0
      %v415 = vadd.f32 %v401, 0.0
      %v416 = vadd.f32 %v412, %v414
      %v417 = vadd.f32 %v413, %v415
      %418 = vst [vmem:[%s350] sm:$0xff] %v416
      %419 = vst [vmem:[%s350 + $0x8] sm:$0xff] %v417
      %v420 = vld [vmem:[%s355] sm:$0xff]
      %v421 = vld [vmem:[%s355 + $0x8] sm:$0xff]
      %v422 = vadd.f32 %v402, 0.0
      %v423 = vadd.f32 %v403, 0.0
      %v424 = vadd.f32 %v420, %v422
      %v425 = vadd.f32 %v421, %v423
      %426 = vst [vmem:[%s355] sm:$0xff] %v424
      %427 = vst [vmem:[%s355 + $0x8] sm:$0xff] %v425
      %p428 = scmp.lt.s32.totalorder %s21, 1
      %s429 = scalar_select %p428, %s21, 1
      %s430 = smul.addr %s429, 2
      %s431 = smul.addr %s430, 8
      %s432 = scalar_lea.vmem %s3, %s431
      %p433 = scmp.lt.s32.totalorder %s21, 1
      %s434 = scalar_select %p433, %s21, 1
      %s435 = smul.addr %s434, 2
      %s436 = smul.addr %s435, 8
      %s437 = scalar_lea.vmem %s4, %s436
      %p438 = scmp.lt.s32.totalorder %s21, 1
      %s439 = scalar_select %p438, %s21, 1
      %s440 = smul.addr %s439, 2
      %s441 = smul.addr %s440, 8
      %s442 = scalar_lea.vmem %s5, %s441
      // Predicated region
      $region37: #{weighted_soft_dice_loss.1} parent=31 // pred_check
        %p443 = pneg %p143
      $region38: #{weighted_soft_dice_loss.1} parent=31 // pred_check_branch
        %445 = sbr.rel (%p443) target = $region40
      $region39: #{weighted_soft_dice_loss.1} parent=31 // pred_region
        _
      $region40: #{weighted_soft_dice_loss.1} parent=31 // pred_fallthru
        _
      // Predicated region
      $region41: #{weighted_soft_dice_loss.1} parent=31 // pred_check
        %p446 = pneg %p169
      $region42: #{weighted_soft_dice_loss.1} parent=31 // pred_check_branch
        %448 = sbr.rel (%p446) target = $region44
      $region43: #{weighted_soft_dice_loss.1} parent=31 // pred_region
        _
      $region44: #{weighted_soft_dice_loss.1} parent=31 // pred_fallthru
        _
      // Predicated region
      $region45: #{weighted_soft_dice_loss.1} parent=31 // pred_check
        %p449 = pneg %p195
      $region46: #{weighted_soft_dice_loss.1} parent=31 // pred_check_branch
        %451 = sbr.rel (%p449) target = $region48
      $region47: #{weighted_soft_dice_loss.1} parent=31 // pred_region
        _
      $region48: #{weighted_soft_dice_loss.1} parent=31 // pred_fallthru
        _
    $region32: #{weighted_soft_dice_loss.1} parent=5 // pred_fallthru
      _
    %p452 = scmp.le.s32.totalorder 2, %s12
    // Predicated region
    $region49: #{weighted_soft_dice_loss.1} parent=5 // pred_check
      %p453 = pneg %p452
    $region50: #{weighted_soft_dice_loss.1} parent=5 // pred_check_branch
      %455 = sbr.rel (%p453) target = $region52
    $region51: #{weighted_soft_dice_loss.1} parent=5 // pred_region
      %s456 = ssub.s32 %s12, 2
      // Predicated region
      $region53: #{weighted_soft_dice_loss.1} parent=51 // pred_check
        %p457 = pneg %p149
      $region54: #{weighted_soft_dice_loss.1} parent=51 // pred_check_branch
        %459 = sbr.rel (%p457) target = $region56
      $region55: #{weighted_soft_dice_loss.1} parent=51 // pred_region
        %p460 = scmp.lt.s32.totalorder %s23, 1
        %s461 = scalar_select %p460, %s23, 1
        %s462 = smul.addr %s461, 2
        %s463 = smul.addr %s462, 8
        %s464 = scalar_lea.vmem %s3, %s463
      $region56: #{weighted_soft_dice_loss.1} parent=51 // pred_fallthru
        _
      // Predicated region
      $region57: #{weighted_soft_dice_loss.1} parent=51 // pred_check
        %p465 = pneg %p175
      $region58: #{weighted_soft_dice_loss.1} parent=51 // pred_check_branch
        %467 = sbr.rel (%p465) target = $region60
      $region59: #{weighted_soft_dice_loss.1} parent=51 // pred_region
        %p468 = scmp.lt.s32.totalorder %s23, 1
        %s469 = scalar_select %p468, %s23, 1
        %s470 = smul.addr %s469, 2
        %s471 = smul.addr %s470, 8
        %s472 = scalar_lea.vmem %s4, %s471
      $region60: #{weighted_soft_dice_loss.1} parent=51 // pred_fallthru
        _
      // Predicated region
      $region61: #{weighted_soft_dice_loss.1} parent=51 // pred_check
        %p473 = pneg %p201
      $region62: #{weighted_soft_dice_loss.1} parent=51 // pred_check_branch
        %475 = sbr.rel (%p473) target = $region64
      $region63: #{weighted_soft_dice_loss.1} parent=51 // pred_region
        %p476 = scmp.lt.s32.totalorder %s23, 1
        %s477 = scalar_select %p476, %s23, 1
        %s478 = smul.addr %s477, 2
        %s479 = smul.addr %s478, 8
        %s480 = scalar_lea.vmem %s5, %s479
      $region64: #{weighted_soft_dice_loss.1} parent=51 // pred_fallthru
        _
    $region52: #{weighted_soft_dice_loss.1} parent=5 // pred_fallthru
      _
  $region6: #{weighted_soft_dice_loss.1} parent=0 // loop_footer
    %s16 = sadd.s32 1, %s12
  $region7: #{weighted_soft_dice_loss.1} parent=0 // loop_footer_branch
    %11 = sbr.rel target = $region3
  $region8: #{weighted_soft_dice_loss.1} parent=0 // loop_exit
    _

</llo_original>
